<compile_context>
chip_gen: v7x
topology: tpu7x:2x2x1
jax: 0.10.0
libtpu: 0.0.40
codegen_flags: <defaults>
</compile_context>

<pallas_src>
import functools

import jax
import jax.numpy as jnp
from jax import lax
from jax.experimental import pallas as pl
from jax.experimental.pallas import tpu as pltpu


# ---------------------------------------------------------------------------
# Kernel
# ---------------------------------------------------------------------------
def _distmult_kernel(obj_ref, ent_ref, bias_ref, out_ref):
    """Fused: sigmoid(obj @ ent + bias) for one (B-tile, E-tile).

    obj_ref : (tb, D)  bf16   -- (sub_emb * rel_emb), precomputed in wrapper
    ent_ref : (D, te)  bf16   -- transposed entity table tile (resident over B)
    bias_ref: (1, te)  f32
    out_ref : (tb, te) f32
    """
    logits = lax.dot_general(
        obj_ref[...], ent_ref[...],
        dimension_numbers=(((1,), (0,)), ((), ())),   # A[M,K] x B[K,N]
        preferred_element_type=jnp.float32)           # (tb, te) f32 accumulate
    out_ref[...] = jax.nn.sigmoid(logits + bias_ref[...]).astype(out_ref.dtype)


# ---------------------------------------------------------------------------
# Tile / VMEM selection (generation aware)
# ---------------------------------------------------------------------------
def _round_up(x, m):
    return ((x + m - 1) // m) * m


def _vmem_capacity_bytes():
    try:
        return int(pltpu.get_tpu_info().vmem_capacity_bytes)
    except Exception:
        return 64 * 1024 * 1024   # conservative (v7x per-TC physical VMEM)


def _working_set_bytes(tb, te, D, ent_bytes):
    return (2 * te * D * ent_bytes     # entity tiles (double-buffered)
            + 2 * tb * D * 2           # obj bf16 tiles (double-buffered)
            + 2 * tb * te * 4          # f32 output tiles (double-buffered)
            + 2 * te * 4)              # bias tiles


def _select_tiles(B, E, D, ent_bytes):
    cap = _vmem_capacity_bytes()
    budget = int(cap * 0.45)           # ~28 MiB on v7x, ~57 MiB on v5e/v6e
    B_cap = _round_up(B, 8)
    E_cap = _round_up(E, 128)

    best = None
    for tb in (512, 256, 128, 64, 32, 16, 8):
        tb_eff = min(tb, B_cap)                       # multiple of 8
        for te in (8192, 4096, 2048, 1024, 512, 256, 128):
            te_eff = min(te, E_cap)                   # multiple of 128
            need = _working_set_bytes(tb_eff, te_eff, D, ent_bytes)
            if need > budget:
                continue
            key = (tb_eff * te_eff, tb_eff)           # fewest steps, widest MXU M
            if best is None or key > best[:1][0] if False else (best is None or key > best[0]):
                best = (key, tb_eff, te_eff, need)
    if best is None:                                  # extremely large D fallback
        tb_eff, te_eff = min(8, B_cap), min(128, E_cap)
        best = ((0, 0), tb_eff, te_eff,
                _working_set_bytes(tb_eff, te_eff, D, ent_bytes))

    _, tb, te, need = best
    # Explicit VMEM limit with headroom; never request the full physical size.
    vmem_limit = min(int(cap * 0.75), max(32 * 1024 * 1024, need + (8 << 20)))
    vmem_limit = max(vmem_limit, need + (2 << 20))
    return tb, te, int(vmem_limit)


# ---------------------------------------------------------------------------
# pallas_call wrapper
# ---------------------------------------------------------------------------
@functools.partial(jax.jit, static_argnames=("tb", "te", "vmem_limit"))
def _distmult_score_padded(obj_bf16, ent_t, bias2d, *, tb, te, vmem_limit):
    B, D = obj_bf16.shape
    _, E = ent_t.shape

    B_pad = _round_up(B, tb)
    E_pad = _round_up(E, te)
    if B_pad != B:
        obj_bf16 = jnp.pad(obj_bf16, ((0, B_pad - B), (0, 0)))
    if E_pad != E:
        ent_t = jnp.pad(ent_t, ((0, 0), (0, E_pad - E)))
        bias2d = jnp.pad(bias2d, ((0, 0), (0, E_pad - E)))

    grid = (E_pad // te, B_pad // tb)   # E outermost: entity tile streamed once

    out = pl.pallas_call(
        _distmult_kernel,
        out_shape=jax.ShapeDtypeStruct((B_pad, E_pad), jnp.float32),
        grid_spec=pltpu.PrefetchScalarGridSpec(
            num_scalar_prefetch=0,
            grid=grid,
            in_specs=[
                pl.BlockSpec((tb, D), lambda j, i: (i, 0)),   # obj (bf16)
                pl.BlockSpec((D, te), lambda j, i: (0, j)),   # ent^T (bf16), resident over i
                pl.BlockSpec((1, te), lambda j, i: (0, j)),   # bias (f32)
            ],
            out_specs=pl.BlockSpec((tb, te), lambda j, i: (i, j)),
        ),
        compiler_params=pltpu.CompilerParams(
            dimension_semantics=("parallel", "arbitrary"),
            vmem_limit_bytes=vmem_limit),
    )(obj_bf16, ent_t, bias2d)

    if B_pad != B or E_pad != E:
        out = out[:B, :E]
    return out


def distmult_score(obj_bf16, ent_t, bias):
    """sigmoid(obj @ ent_t + bias); obj (B,D) bf16, ent_t (D,E) bf16, bias (E,)."""
    B, D = obj_bf16.shape
    D2, E = ent_t.shape
    assert D == D2 and bias.shape == (E,)
    tb, te, vmem_limit = _select_tiles(B, E, D, ent_t.dtype.itemsize)
    bias2d = bias.reshape(1, E).astype(jnp.float32)
    return _distmult_score_padded(obj_bf16, ent_t, bias2d,
                                  tb=tb, te=te, vmem_limit=vmem_limit)


# ---------------------------------------------------------------------------
# Module
# ---------------------------------------------------------------------------
class CompGCNDistMultPallas:
    """JAX re-implementation of CompGCN_DistMult (disable_gnn_encoder branch)."""

    def __init__(self, num_ent, num_rel, init_dim, key):
        k1, k2 = jax.random.split(key)
        # get_param -> xavier_normal_; deterministic synthetic init here.
        std_e = (2.0 / (num_ent + init_dim)) ** 0.5
        std_r = (2.0 / (2 * num_rel + init_dim)) ** 0.5
        self.init_embed = std_e * jax.random.normal(k1, (num_ent, init_dim), jnp.float32)
        self.init_rel = std_r * jax.random.normal(k2, (2 * num_rel, init_dim), jnp.float32)
        self.bias = jnp.zeros((num_ent,), jnp.float32)  # registered as zeros in __init__
        # Transposed bf16 entity table (D, E): canonical MXU RHS layout, halves
        # the dominant HBM stream; computed once, reused across forward calls.
        self.ent_t_bf16 = self.init_embed.T.astype(jnp.bfloat16)

    def forward(self, sub, rel):
        # forward_base with disable_gnn_encoder=True, score_func='distmult',
        # dropout in eval mode -> identity.
        sub_emb = jnp.take(self.init_embed, sub, axis=0)   # index_select (glue)
        rel_emb = jnp.take(self.init_rel, rel, axis=0)
        # Single bf16 operand streamed into the kernel (f32 multiply on host-side
        # XLA, bf16 only for the MXU feed).
        obj = (sub_emb * rel_emb).astype(jnp.bfloat16)
        return distmult_score(obj, self.ent_t_bf16, self.bias)


def _reference(model, sub, rel):
    sub_emb = model.init_embed[sub]
    rel_emb = model.init_rel[rel]
    logits = (sub_emb * rel_emb) @ model.init_embed.T + model.bias[None, :]
    return jax.nn.sigmoid(logits)


if __name__ == "__main__":
    key = jax.random.PRNGKey(0)
    k_param, k_sub, k_rel = jax.random.split(key, 3)

    NUM_ENT, NUM_REL, INIT_DIM, BATCH = 256, 8, 256, 16

    model = CompGCNDistMultPallas(NUM_ENT, NUM_REL, INIT_DIM, k_param)

    sub = jax.random.randint(k_sub, (BATCH,), 0, NUM_ENT, dtype=jnp.int32)
    rel = jax.random.randint(k_rel, (BATCH,), 0, 2 * NUM_REL, dtype=jnp.int32)

    score = model.forward(sub, rel)
    jax.block_until_ready(score)

    ref = _reference(model, sub, rel)   # f32 reference
    assert score.shape == (BATCH, NUM_ENT)
    # bf16 obj / bf16 entity-table MXU operands -> loosened tolerance vs f32 ref.
    assert jnp.allclose(score, ref, atol=2e-2), "mismatch vs reference"

    print("KERNEL_OK")
</pallas_src>

<mosaic_0001>
module attributes {stable_mosaic.version = 11 : i64} {
  func.func @_distmult_kernel(%arg0: i32, %arg1: i32, %arg2: memref<16x256xbf16, #tpu.memory_space<vmem>>, %arg3: memref<256x256xbf16, #tpu.memory_space<vmem>>, %arg4: memref<1x256xf32, #tpu.memory_space<vmem>>, %arg5: memref<16x256xf32, #tpu.memory_space<vmem>>) attributes {dimension_semantics = [#tpu.dimension_semantics<parallel>, #tpu.dimension_semantics<arbitrary>], iteration_bounds = array<i64: 1, 1>, scalar_prefetch = 0 : i64, scratch_operands = 0 : i64, tpu.core_type = #tpu.core_type<tc>, window_params = [{transform_indices = @transform_0, window_bounds = array<i64: 16, 256>}, {transform_indices = @transform_1, window_bounds = array<i64: 256, 256>}, {transform_indices = @transform_2, window_bounds = array<i64: 1, 256>}, {transform_indices = @transform_3, window_bounds = array<i64: 16, 256>}]} {
    %c0 = arith.constant 0 : index
    %c0_0 = arith.constant 0 : index
    %0 = vector.load %arg2[%c0, %c0_0] : memref<16x256xbf16, #tpu.memory_space<vmem>>, vector<16x256xbf16>
    %c0_1 = arith.constant 0 : index
    %c0_2 = arith.constant 0 : index
    %1 = vector.load %arg3[%c0_1, %c0_2] : memref<256x256xbf16, #tpu.memory_space<vmem>>, vector<256x256xbf16>
    %cst = arith.constant dense<0.000000e+00> : vector<16x256xf32>
    %2 = tpu.matmul %0, %1, %cst {dimension_numbers = #tpu.dot_dimension_numbers<[1], [0], [0], [1], [0, 0, 1, 1], [], []>} : vector<16x256xbf16>, vector<256x256xbf16>, vector<16x256xf32> -> vector<16x256xf32>
    %c0_3 = arith.constant 0 : index
    %c0_4 = arith.constant 0 : index
    %3 = vector.load %arg4[%c0_3, %c0_4] : memref<1x256xf32, #tpu.memory_space<vmem>>, vector<1x256xf32>
    %4 = vector.broadcast %3 : vector<1x256xf32> to vector<16x256xf32>
    %5 = arith.addf %2, %4 : vector<16x256xf32>
    %6 = arith.negf %5 : vector<16x256xf32>
    %7 = math.exp %6 : vector<16x256xf32>
    %cst_5 = arith.constant 1.000000e+00 : f32
    %8 = vector.broadcast %cst_5 : f32 to vector<16x256xf32>
    %9 = arith.addf %8, %7 : vector<16x256xf32>
    %10 = arith.divf %8, %9 : vector<16x256xf32>
    %c0_6 = arith.constant 0 : index
    %c0_7 = arith.constant 0 : index
    %11 = vector.load %arg5[%c0_6, %c0_7] : memref<16x256xf32, #tpu.memory_space<vmem>>, vector<16x256xf32>
    tpu.vector_store %arg5[%c0_6, %c0_7], %10 {strides = array<i32>} : memref<16x256xf32, #tpu.memory_space<vmem>>, vector<16x256xf32>,
    return
  }
  func.func @transform_0(%arg0: i32, %arg1: i32) -> (i32, i32) {
    %c0_i32 = arith.constant 0 : i32
    %c0_i32_0 = arith.constant 0 : i32
    return %arg1, %c0_i32 : i32, i32
  }
  func.func @transform_1(%arg0: i32, %arg1: i32) -> (i32, i32) {
    %c0_i32 = arith.constant 0 : i32
    %c0_i32_0 = arith.constant 0 : i32
    return %c0_i32, %arg0 : i32, i32
  }
  func.func @transform_2(%arg0: i32, %arg1: i32) -> (i32, i32) {
    %c0_i32 = arith.constant 0 : i32
    %c0_i32_0 = arith.constant 0 : i32
    return %c0_i32, %arg0 : i32, i32
  }
  func.func @transform_3(%arg0: i32, %arg1: i32) -> (i32, i32) {
    %c0_i32 = arith.constant 0 : i32
    return %arg1, %arg0 : i32, i32
  }
}

</mosaic_0001>

<llo_original>
// kernel: _distmult_score_padded.1
$region0: #{_distmult_score_padded.1}
  #allocation0 [shape = 'u32[]', space=smem, size = 0x4, offset = 0x4, fixed_abs, tag = 'smem constant byte address 0x4 - core index']
  #allocation1 [shape = 'u32[144,128]{1,0:T(1,128)}', space=vmem, size = 0x12000, scoped, tag = 'internal scratch']
  %s0 = inlined_call_operand.hbm [shape: bf16[16,256], index: 0, kind: input, shape index: {}]
  %s1 = inlined_call_operand.hbm [shape: bf16[256,256], index: 1, kind: input, shape index: {}]
  %s2 = inlined_call_operand.vmem [shape: f32[1,256], index: 2, kind: input, shape index: {}]
  %s3 = inlined_call_operand.hbm [shape: f32[16,256], index: 3, kind: output, shape index: {}]
  %s4 = sld [smem:[#allocation0]]
  $region30: #{_distmult_score_padded.1} parent=0
    _
  %s6 = ssub.s32 1, %s4
  %s7 = scalar_select 0, %s6, %s4
  $region1: #{_distmult_score_padded.1} parent=0
    #allocation2 [shape = 'u8[8192]{0}', space=vmem, size = 0x2000, scoped, tag = 'input window, operand 0, single buffered']
    #allocation3 [shape = 's32[1]{0}', space=sflag, size = 0x4, scoped, tag = 'scoped memory for _distmult_score_padded.1']
    #allocation4 [shape = 's32[1]{0}', space=sflag, size = 0x4, scoped, tag = 'scoped memory for _distmult_score_padded.1']
    #allocation5 [shape = 'u8[131072]{0}', space=vmem, size = 0x20000, scoped, tag = 'input window, operand 1, single buffered']
    #allocation6 [shape = 's32[1]{0}', space=sflag, size = 0x4, scoped, tag = 'scoped memory for _distmult_score_padded.1']
    #allocation7 [shape = 'u8[16384]{0}', space=vmem, size = 0x4000, scoped, tag = 'output window, operand 0, single buffered']
    %8 = vsyncpa [#allocation3], 0
    %9 = vsyncpa [#allocation6], 0
    %10 = vsyncpa [#allocation4], 0
    // Predicated region
    $region2: #{_distmult_score_padded.1} parent=1 // pred_check
      _
    $region3: #{_distmult_score_padded.1} parent=1 // pred_check_branch
      %12 = sbr.rel (0) target = $region5
    $region4: #{_distmult_score_padded.1} parent=1 // pred_region
      %s14 = ssub.s32 256, 256
      %15 = vsyncadd [#allocation3], %s14
      %s16 = sshll.u32 [#allocation2], 4
      %s17 = int_to_ptr.vmem [resolvable:$true] %s16
      %22 = dma.hbm_to_vmem [thread:$0]  %s0, 256, %s17, [#allocation3], 128, 128, 8
    $region5: #{_distmult_score_padded.1} parent=1 // pred_fallthru
      _
    // Predicated region
    $region6: #{_distmult_score_padded.1} parent=1 // pred_check
      _
    $region7: #{_distmult_score_padded.1} parent=1 // pred_check_branch
      %24 = sbr.rel (0) target = $region9
    $region8: #{_distmult_score_padded.1} parent=1 // pred_region
      %s26 = ssub.s32 4096, 4096
      %27 = vsyncadd [#allocation6], %s26
      %s28 = sshll.u32 [#allocation5], 4
      %s29 = int_to_ptr.vmem [resolvable:$true] %s28
      %34 = dma.hbm_to_vmem [thread:$0]  %s1, 4096, %s29, [#allocation6], 128, 128, 8
    $region9: #{_distmult_score_padded.1} parent=1 // pred_fallthru
      _
    // Predicated region
    $region10: #{_distmult_score_padded.1} parent=1 // pred_check
      _
    $region11: #{_distmult_score_padded.1} parent=1 // pred_check_branch
      %36 = sbr.rel (0) target = $region13
    $region12: #{_distmult_score_padded.1} parent=1 // pred_region
      _
    $region13: #{_distmult_score_padded.1} parent=1 // pred_fallthru
      _
    // Predicated region
    $region14: #{_distmult_score_padded.1} parent=1 // pred_check
      _
    $region15: #{_distmult_score_padded.1} parent=1 // pred_check_branch
      %38 = sbr.rel (0) target = $region17
    $region16: #{_distmult_score_padded.1} parent=1 // pred_region
      %39 = dma.done [#allocation3], 256
    $region17: #{_distmult_score_padded.1} parent=1 // pred_fallthru
      _
    // Predicated region
    $region18: #{_distmult_score_padded.1} parent=1 // pred_check
      _
    $region19: #{_distmult_score_padded.1} parent=1 // pred_check_branch
      %41 = sbr.rel (0) target = $region21
    $region20: #{_distmult_score_padded.1} parent=1 // pred_region
      %42 = dma.done [#allocation6], 4096
    $region21: #{_distmult_score_padded.1} parent=1 // pred_fallthru
      _
    %v43 = vld [vmem:[#allocation2] sm:$0xff]
    %v44 = vld [vmem:[#allocation2 + $0x8] sm:$0xff]
    %v45 = vld [vmem:[#allocation5] sm:$0xff]
    %v46 = vld [vmem:[#allocation5 + $0x8] sm:$0xff]
    %v47 = vld [vmem:[#allocation5 + $0x10] sm:$0xff]
    %v48 = vld [vmem:[#allocation5 + $0x18] sm:$0xff]
    %v49 = vld [vmem:[#allocation5 + $0x20] sm:$0xff]
    %v50 = vld [vmem:[#allocation5 + $0x28] sm:$0xff]
    %v51 = vld [vmem:[#allocation5 + $0x30] sm:$0xff]
    %v52 = vld [vmem:[#allocation5 + $0x38] sm:$0xff]
    %v53 = vld [vmem:[#allocation5 + $0x40] sm:$0xff]
    %v54 = vld [vmem:[#allocation5 + $0x48] sm:$0xff]
    %v55 = vld [vmem:[#allocation5 + $0x50] sm:$0xff]
    %v56 = vld [vmem:[#allocation5 + $0x58] sm:$0xff]
    %v57 = vld [vmem:[#allocation5 + $0x60] sm:$0xff]
    %v58 = vld [vmem:[#allocation5 + $0x68] sm:$0xff]
    %v59 = vld [vmem:[#allocation5 + $0x70] sm:$0xff]
    %v60 = vld [vmem:[#allocation5 + $0x78] sm:$0xff]
    %v61 = vld [vmem:[#allocation5 + $0x80] sm:$0xff]
    %v62 = vld [vmem:[#allocation5 + $0x88] sm:$0xff]
    %v63 = vld [vmem:[#allocation5 + $0x90] sm:$0xff]
    %v64 = vld [vmem:[#allocation5 + $0x98] sm:$0xff]
    %v65 = vld [vmem:[#allocation5 + $0xa0] sm:$0xff]
    %v66 = vld [vmem:[#allocation5 + $0xa8] sm:$0xff]
    %v67 = vld [vmem:[#allocation5 + $0xb0] sm:$0xff]
    %v68 = vld [vmem:[#allocation5 + $0xb8] sm:$0xff]
    %v69 = vld [vmem:[#allocation5 + $0xc0] sm:$0xff]
    %v70 = vld [vmem:[#allocation5 + $0xc8] sm:$0xff]
    %v71 = vld [vmem:[#allocation5 + $0xd0] sm:$0xff]
    %v72 = vld [vmem:[#allocation5 + $0xd8] sm:$0xff]
    %v73 = vld [vmem:[#allocation5 + $0xe0] sm:$0xff]
    %v74 = vld [vmem:[#allocation5 + $0xe8] sm:$0xff]
    %v75 = vld [vmem:[#allocation5 + $0xf0] sm:$0xff]
    %v76 = vld [vmem:[#allocation5 + $0xf8] sm:$0xff]
    %v77 = vld [vmem:[%s2] sm:$0x3]
    %v79 = vlaneseq
    %v80 = vshrl.u32 %v79, 7
    %v81 = vsub.s32 0, %v80
    %v82 = vrot.slane %v77, %v81
    %v83 = vlaneseq
    %v84 = vshrl.u32 %v83, 7
    %v85 = vsub.s32 1, %v84
    %v86 = vrot.slane %v77, %v85
    %v91 = vunpack.c.l.b16 %v43
    %v92 = vunpack.c.h.b16 %v43
    %v93 = vunpack.c.l.b16 %v44
    %v94 = vunpack.c.h.b16 %v44
    %v95 = vpack.c.b16 %v93, %v91
    %v96 = vpack.c.b16 %v94, %v92
    %v131 = vunpack.c.l.b16 %v45
    %v132 = vunpack.c.h.b16 %v45
    %v133 = vunpack.c.l.b16 %v46
    %v134 = vunpack.c.h.b16 %v46
    %v135 = vunpack.c.l.b16 %v47
    %v136 = vunpack.c.h.b16 %v47
    %v137 = vunpack.c.l.b16 %v48
    %v138 = vunpack.c.h.b16 %v48
    %v139 = vunpack.c.l.b16 %v49
    %v140 = vunpack.c.h.b16 %v49
    %v141 = vunpack.c.l.b16 %v50
    %v142 = vunpack.c.h.b16 %v50
    %v143 = vunpack.c.l.b16 %v51
    %v144 = vunpack.c.h.b16 %v51
    %v145 = vunpack.c.l.b16 %v52
    %v146 = vunpack.c.h.b16 %v52
    %v147 = vunpack.c.l.b16 %v53
    %v148 = vunpack.c.h.b16 %v53
    %v149 = vunpack.c.l.b16 %v54
    %v150 = vunpack.c.h.b16 %v54
    %v151 = vunpack.c.l.b16 %v55
    %v152 = vunpack.c.h.b16 %v55
    %v153 = vunpack.c.l.b16 %v56
    %v154 = vunpack.c.h.b16 %v56
    %v155 = vunpack.c.l.b16 %v57
    %v156 = vunpack.c.h.b16 %v57
    %v157 = vunpack.c.l.b16 %v58
    %v158 = vunpack.c.h.b16 %v58
    %v159 = vunpack.c.l.b16 %v59
    %v160 = vunpack.c.h.b16 %v59
    %v161 = vunpack.c.l.b16 %v60
    %v162 = vunpack.c.h.b16 %v60
    %v163 = vunpack.c.l.b16 %v61
    %v164 = vunpack.c.h.b16 %v61
    %v165 = vunpack.c.l.b16 %v62
    %v166 = vunpack.c.h.b16 %v62
    %v167 = vunpack.c.l.b16 %v63
    %v168 = vunpack.c.h.b16 %v63
    %v169 = vunpack.c.l.b16 %v64
    %v170 = vunpack.c.h.b16 %v64
    %v171 = vunpack.c.l.b16 %v65
    %v172 = vunpack.c.h.b16 %v65
    %v173 = vunpack.c.l.b16 %v66
    %v174 = vunpack.c.h.b16 %v66
    %v175 = vunpack.c.l.b16 %v67
    %v176 = vunpack.c.h.b16 %v67
    %v177 = vunpack.c.l.b16 %v68
    %v178 = vunpack.c.h.b16 %v68
    %v179 = vunpack.c.l.b16 %v69
    %v180 = vunpack.c.h.b16 %v69
    %v181 = vunpack.c.l.b16 %v70
    %v182 = vunpack.c.h.b16 %v70
    %v183 = vunpack.c.l.b16 %v71
    %v184 = vunpack.c.h.b16 %v71
    %v185 = vunpack.c.l.b16 %v72
    %v186 = vunpack.c.h.b16 %v72
    %v187 = vunpack.c.l.b16 %v73
    %v188 = vunpack.c.h.b16 %v73
    %v189 = vunpack.c.l.b16 %v74
    %v190 = vunpack.c.h.b16 %v74
    %v191 = vunpack.c.l.b16 %v75
    %v192 = vunpack.c.h.b16 %v75
    %v193 = vunpack.c.l.b16 %v76
    %v194 = vunpack.c.h.b16 %v76
    %v195 = vpack.c.b16 %v133, %v131
    %v196 = vpack.c.b16 %v134, %v132
    %v197 = vpack.c.b16 %v137, %v135
    %v198 = vpack.c.b16 %v138, %v136
    %v199 = vpack.c.b16 %v141, %v139
    %v200 = vpack.c.b16 %v142, %v140
    %v201 = vpack.c.b16 %v145, %v143
    %v202 = vpack.c.b16 %v146, %v144
    %v203 = vpack.c.b16 %v149, %v147
    %v204 = vpack.c.b16 %v150, %v148
    %v205 = vpack.c.b16 %v153, %v151
    %v206 = vpack.c.b16 %v154, %v152
    %v207 = vpack.c.b16 %v157, %v155
    %v208 = vpack.c.b16 %v158, %v156
    %v209 = vpack.c.b16 %v161, %v159
    %v210 = vpack.c.b16 %v162, %v160
    %v211 = vpack.c.b16 %v165, %v163
    %v212 = vpack.c.b16 %v166, %v164
    %v213 = vpack.c.b16 %v169, %v167
    %v214 = vpack.c.b16 %v170, %v168
    %v215 = vpack.c.b16 %v173, %v171
    %v216 = vpack.c.b16 %v174, %v172
    %v217 = vpack.c.b16 %v177, %v175
    %v218 = vpack.c.b16 %v178, %v176
    %v219 = vpack.c.b16 %v181, %v179
    %v220 = vpack.c.b16 %v182, %v180
    %v221 = vpack.c.b16 %v185, %v183
    %v222 = vpack.c.b16 %v186, %v184
    %v223 = vpack.c.b16 %v189, %v187
    %v224 = vpack.c.b16 %v190, %v188
    %v225 = vpack.c.b16 %v193, %v191
    %v226 = vpack.c.b16 %v194, %v192
    %259 = vmatprep.subr.bf16.mxu0 %v196
    %260 = vmatpush1.bf16.msra.mxu0 %v195
    %261 = vmatprep.subr.bf16.mxu0 %v198
    %262 = vmatpush1.bf16.msra.mxu0 %v197
    %263 = vmatprep.subr.bf16.mxu0 %v200
    %264 = vmatpush1.bf16.msra.mxu0 %v199
    %265 = vmatprep.subr.bf16.mxu0 %v202
    %266 = vmatpush1.bf16.msra.mxu0 %v201
    %267 = vmatprep.subr.bf16.mxu0 %v204
    %268 = vmatpush1.bf16.msra.mxu0 %v203
    %269 = vmatprep.subr.bf16.mxu0 %v206
    %270 = vmatpush1.bf16.msra.mxu0 %v205
    %271 = vmatprep.subr.bf16.mxu0 %v208
    %272 = vmatpush1.bf16.msra.mxu0 %v207
    %273 = vmatprep.subr.bf16.mxu0 %v210
    %274 = vmatpush1.bf16.msra.mxu0 %v209
    %275 = vmatprep.subr.bf16.mxu0 %v212
    %276 = vmatpush1.bf16.msra.mxu0 %v211
    %277 = vmatprep.subr.bf16.mxu0 %v214
    %278 = vmatpush1.bf16.msra.mxu0 %v213
    %279 = vmatprep.subr.bf16.mxu0 %v216
    %280 = vmatpush1.bf16.msra.mxu0 %v215
    %281 = vmatprep.subr.bf16.mxu0 %v218
    %282 = vmatpush1.bf16.msra.mxu0 %v217
    %283 = vmatprep.subr.bf16.mxu0 %v220
    %284 = vmatpush1.bf16.msra.mxu0 %v219
    %285 = vmatprep.subr.bf16.mxu0 %v222
    %286 = vmatpush1.bf16.msra.mxu0 %v221
    %287 = vmatprep.subr.bf16.mxu0 %v224
    %288 = vmatpush1.bf16.msra.mxu0 %v223
    %289 = vmatprep.subr.bf16.mxu0 %v226
    %290 = vmatpush1.bf16.msra.mxu0 %v225
    %291 = vmatprep.mubr.bf16.mxu0 %v96
    %292 = vmatmul.mubr.bf16.gmra.mrb[0].mxu0 %v95
    %v293 = vpop.f32.mrb[0].mxu0
    %v294 = vadd.f32 %v82, %v293
    %v295 = vpop.f32.mrb[0].mxu0
    %v296 = vadd.f32 %v86, %v295
    %v297 = vpop.f32.mrb[0].mxu0
    %v298 = vadd.f32 %v82, %v297
    %v299 = vpop.f32.mrb[0].mxu0
    %v300 = vadd.f32 %v86, %v299
    %301 = vdwg.mxu0
    %v302 = vxor.u32 %v294, 2147483648
    %v303 = vxor.u32 %v296, 2147483648
    %v304 = vxor.u32 %v298, 2147483648
    %v305 = vxor.u32 %v300, 2147483648
    %v306 = vmul.f32 %v302, 1.442695
    %v307 = vpow.pop %v306
    %v308 = vmul.f32 %v303, 1.442695
    %v309 = vpow.pop %v308
    %v310 = vmul.f32 %v304, 1.442695
    %v311 = vpow.pop %v310
    %v312 = vmul.f32 %v305, 1.442695
    %v313 = vpow.pop %v312
    %v314 = vadd.f32 %v307, 1.0
    %v315 = vadd.f32 %v309, 1.0
    %v316 = vadd.f32 %v311, 1.0
    %v317 = vadd.f32 %v313, 1.0
    %v318 = vrcp.pop %v314
    %v319 = vmul.f32 1.0, %v318
    %v320 = vrcp.pop %v315
    %v321 = vmul.f32 1.0, %v320
    %v322 = vrcp.pop %v316
    %v323 = vmul.f32 1.0, %v322
    %v324 = vrcp.pop %v317
    %v325 = vmul.f32 1.0, %v324
    %326 = vst [vmem:[#allocation7] sm:$0xff] %v319
    %327 = vst [vmem:[#allocation7 + $0x8] sm:$0xff] %v321
    %328 = vst [vmem:[#allocation7 + $0x10] sm:$0xff] %v323
    %329 = vst [vmem:[#allocation7 + $0x18] sm:$0xff] %v325
    // Predicated region
    $region22: #{_distmult_score_padded.1} parent=1 // pred_check
      _
    $region23: #{_distmult_score_padded.1} parent=1 // pred_check_branch
      %331 = sbr.rel (0) target = $region25
    $region24: #{_distmult_score_padded.1} parent=1 // pred_region
      %s333 = ssub.s32 512, 512
      %334 = vsyncadd [#allocation4], %s333
      %s335 = sshll.u32 [#allocation7], 4
      %s336 = int_to_ptr.vmem [resolvable:$true] %s335
      %341 = dma.vmem_to_hbm [thread:$0]  %s336, 512, %s3, [#allocation4], 256, 256, 16
    $region25: #{_distmult_score_padded.1} parent=1 // pred_fallthru
      _
    // Predicated region
    $region26: #{_distmult_score_padded.1} parent=1 // pred_check
      _
    $region27: #{_distmult_score_padded.1} parent=1 // pred_check_branch
      %343 = sbr.rel (0) target = $region29
    $region28: #{_distmult_score_padded.1} parent=1 // pred_region
      %344 = dma.done [#allocation4], 512
    $region29: #{_distmult_score_padded.1} parent=1 // pred_fallthru
      _
    %345 = vsyncpa [#allocation3], 1
    %346 = vsyncpa [#allocation6], 1
    %347 = vsyncpa [#allocation4], 1

</llo_original>
